<compile_context>
chip_gen: v6e
topology: v6e:2x2x1
jax: 0.10.0
libtpu: 0.0.40
codegen_flags: <defaults>
</compile_context>

<pallas_src>
import functools

import jax
import jax.numpy as jnp
from jax.experimental import pallas as pl
from jax.experimental.pallas import tpu as pltpu


def _residual_block_kernel(x_ref, w1_ref, b1_ref, w2_ref, b2_ref, out_ref,
                           *, seq_len):
    """One grid step = NB full samples, everything VMEM/vreg resident.

    x_ref   : (C, M)    M = NB * L, channels on sublanes, positions on lanes
    w1_ref  : (C, K*C)  conv1 weight, tap-major columns (im2col layout)
    b1_ref  : (C, 1)
    w2_ref  : (C, K*C)  conv2 weight
    b2_ref  : (C, 1)
    out_ref : (C, M)
    """
    C, M = x_ref.shape
    K = w1_ref.shape[1] // C
    pad = K // 2

    x = x_ref[...].astype(jnp.float32)

    # Lane position within its sample; hoisted + shared by both convs.
    l_idx = jax.lax.broadcasted_iota(jnp.int32, (1, M), 1) % seq_len
    masks = {}
    for t in range(K):
        d = t - pad
        if d != 0:
            masks[d] = jnp.logical_and(l_idx + d >= 0, l_idx + d < seq_len)

    def im2col(v):
        # (C, M) -> (K*C, M): tap t reads position m + (t - pad).  Lanes that
        # would fall outside the sample ("same" zero padding, and lanes a
        # wrap-around roll pulls in from a neighbouring sample) are masked 0.
        rows = []
        for t in range(K):
            d = t - pad
            if d == 0:
                rows.append(v)
            else:
                shifted = pltpu.roll(v, shift=(-d) % M, axis=1)  # XLU lane-rotate
                rows.append(jnp.where(masks[d], shifted, 0.0))
        return jnp.concatenate(rows, axis=0)

    # conv1 (stride 1, padding K//2) + bias + ReLU: one MXU push, M-wide output.
    h = jnp.dot(w1_ref[...], im2col(x), preferred_element_type=jnp.float32)
    h = jnp.maximum(h + b1_ref[...], 0.0)

    # conv2 + bias + residual add: one MXU push.
    y = jnp.dot(w2_ref[...], im2col(h), preferred_element_type=jnp.float32)
    y = y + b2_ref[...] + x

    out_ref[...] = y.astype(out_ref.dtype)


def residual_block_pallas(x_ncl, w1, b1, w2, b2, *, samples_per_block=None):
    """Forward of ResidualBlock (ReLU activation).

    x_ncl : (N, C, L) float32 (PyTorch NCW layout)
    w1,w2 : (C_out, C_in, K) PyTorch Conv1d weights (C_out == C_in == C)
    b1,b2 : (C,)
    Returns (N, C, L), same dtype as x.
    """
    N, C, L = x_ncl.shape
    K = w1.shape[-1]
    assert K % 2 == 1, "residual add requires 'same' conv (odd kernel_size)"
    NB = N if samples_per_block is None else samples_per_block
    assert N % NB == 0, "samples_per_block must divide the batch"
    # Partial blocks must either cover the whole lane axis or be lane-aligned.
    assert NB == N or (NB * L) % 128 == 0, "pick NB == N or NB*L % 128 == 0"

    # Layout plumbing outside the kernel (pure XLA transposes on tiny arrays):
    #   activations -> (C, N*L)   (channels on sublanes, positions on lanes)
    #   weights     -> (C_out, K*C_in) im2col, column t*C + i == w[o, i, t]
    x_cm = jnp.transpose(x_ncl, (1, 0, 2)).reshape(C, N * L)
    w1_col = jnp.transpose(w1, (0, 2, 1)).reshape(C, K * C)
    w2_col = jnp.transpose(w2, (0, 2, 1)).reshape(C, K * C)
    b1_c = b1.reshape(C, 1)
    b2_c = b2.reshape(C, 1)

    M_blk = NB * L
    out_cm = pl.pallas_call(
        functools.partial(_residual_block_kernel, seq_len=L),
        out_shape=jax.ShapeDtypeStruct((C, N * L), x_cm.dtype),
        grid=(N // NB,),
        in_specs=[
            pl.BlockSpec((C, M_blk), lambda n: (0, n)),
            pl.BlockSpec((C, K * C), lambda n: (0, 0)),
            pl.BlockSpec((C, 1), lambda n: (0, 0)),
            pl.BlockSpec((C, K * C), lambda n: (0, 0)),
            pl.BlockSpec((C, 1), lambda n: (0, 0)),
        ],
        out_specs=pl.BlockSpec((C, M_blk), lambda n: (0, n)),
        compiler_params=pltpu.CompilerParams(
            dimension_semantics=("parallel",)),
    )(x_cm, w1_col, b1_c, w2_col, b2_c)

    return jnp.transpose(out_cm.reshape(C, N, L), (1, 0, 2))


# ---------------- pure-JAX reference (mirrors the PyTorch module) -------------
def _conv1d_ncl(x_ncl, w, b, pad):
    y = jax.lax.conv_general_dilated(
        x_ncl, w, window_strides=(1,), padding=[(pad, pad)],
        dimension_numbers=("NCH", "OIH", "NCH"))
    return y + b[None, :, None]


def residual_block_ref(x_ncl, w1, b1, w2, b2):
    pad = w1.shape[-1] // 2
    h = jnp.maximum(_conv1d_ncl(x_ncl, w1, b1, pad), 0.0)   # activation = ReLU
    y = _conv1d_ncl(h, w2, b2, pad)
    return y + x_ncl


if __name__ == "__main__":
    # Small shapes consistent with the module: batch=2, channels=8, seq=32, K=3.
    N, C, L, K = 2, 8, 32, 3
    key = jax.random.PRNGKey(0)
    kx, k1, k2, k3, k4 = jax.random.split(key, 5)

    x_ncl = jax.random.normal(kx, (N, C, L), jnp.float32)           # PyTorch NCW
    w1 = jax.random.normal(k1, (C, C, K), jnp.float32) * 0.1        # (out, in, K)
    b1 = jax.random.normal(k2, (C,), jnp.float32) * 0.1
    w2 = jax.random.normal(k3, (C, C, K), jnp.float32) * 0.1
    b2 = jax.random.normal(k4, (C,), jnp.float32) * 0.1

    out = residual_block_pallas(x_ncl, w1, b1, w2, b2)
    jax.block_until_ready(out)

    ref = residual_block_ref(x_ncl, w1, b1, w2, b2)
    assert out.shape == ref.shape and out.dtype == ref.dtype
    err = jnp.max(jnp.abs(out - ref))
    assert jnp.allclose(out, ref, atol=1e-4, rtol=1e-4), f"max abs err = {err}"

    print("KERNEL_OK")
</pallas_src>

<mosaic_0001>
module attributes {stable_mosaic.version = 11 : i64} {
  func.func @_residual_block_kernel(%arg0: i32, %arg1: memref<8x64xf32, #tpu.memory_space<vmem>>, %arg2: memref<8x24xf32, #tpu.memory_space<vmem>>, %arg3: memref<8x1xf32, #tpu.memory_space<vmem>>, %arg4: memref<8x24xf32, #tpu.memory_space<vmem>>, %arg5: memref<8x1xf32, #tpu.memory_space<vmem>>, %arg6: memref<8x64xf32, #tpu.memory_space<vmem>>) attributes {dimension_semantics = [#tpu.dimension_semantics<parallel>], iteration_bounds = array<i64: 1>, scalar_prefetch = 0 : i64, scratch_operands = 0 : i64, tpu.core_type = #tpu.core_type<tc>, window_params = [{transform_indices = @transform_0, window_bounds = array<i64: 8, 64>}, {pipeline_mode = #tpu.pipeline_mode<synchronous>, transform_indices = @transform_1, window_bounds = array<i64: 8, 24>}, {pipeline_mode = #tpu.pipeline_mode<synchronous>, transform_indices = @transform_2, window_bounds = array<i64: 8, 1>}, {pipeline_mode = #tpu.pipeline_mode<synchronous>, transform_indices = @transform_3, window_bounds = array<i64: 8, 24>}, {pipeline_mode = #tpu.pipeline_mode<synchronous>, transform_indices = @transform_4, window_bounds = array<i64: 8, 1>}, {transform_indices = @transform_5, window_bounds = array<i64: 8, 64>}]} {
    %c0 = arith.constant 0 : index
    %c0_0 = arith.constant 0 : index
    %0 = vector.load %arg1[%c0, %c0_0] : memref<8x64xf32, #tpu.memory_space<vmem>>, vector<8x64xf32>
    %1 = tpu.iota {dimensions = array<i32: 1>} : vector<1x64xi32>
    %c32_i32 = arith.constant 32 : i32
    %c0_i32 = arith.constant 0 : i32
    %2 = arith.cmpi eq, %c32_i32, %c0_i32 : i32
    %c1_i32 = arith.constant 1 : i32
    %3 = arith.select %2, %c1_i32, %c32_i32 : i32
    %4 = vector.broadcast %3 : i32 to vector<1x64xi32>
    %5 = arith.remsi %1, %4 : vector<1x64xi32>
    %c0_i32_1 = arith.constant 0 : i32
    %6 = vector.broadcast %c0_i32_1 : i32 to vector<1x64xi32>
    %7 = arith.cmpi ne, %5, %6 : vector<1x64xi32>
    %c0_i32_2 = arith.constant 0 : i32
    %8 = vector.broadcast %c0_i32_2 : i32 to vector<1x64xi32>
    %9 = arith.cmpi slt, %5, %8 : vector<1x64xi32>
    %c0_i32_3 = arith.constant 0 : i32
    %10 = arith.cmpi slt, %3, %c0_i32_3 : i32
    %11 = vector.broadcast %10 : i1 to vector<1x64xi1>
    %12 = vector.broadcast %11 : vector<1x64xi1> to vector<1x64xi1>
    %13 = arith.xori %9, %12 : vector<1x64xi1>
    %14 = arith.andi %13, %7 : vector<1x64xi1>
    %15 = vector.broadcast %3 : i32 to vector<1x64xi32>
    %16 = arith.addi %5, %15 : vector<1x64xi32>
    %17 = arith.select %14, %16, %5 : vector<1x64xi1>, vector<1x64xi32>
    %c-1_i32 = arith.constant -1 : i32
    %18 = vector.broadcast %c-1_i32 : i32 to vector<1x64xi32>
    %19 = arith.addi %17, %18 : vector<1x64xi32>
    %c0_i32_4 = arith.constant 0 : i32
    %20 = vector.broadcast %c0_i32_4 : i32 to vector<1x64xi32>
    %21 = arith.cmpi sge, %19, %20 : vector<1x64xi32>
    %c-1_i32_5 = arith.constant -1 : i32
    %22 = vector.broadcast %c-1_i32_5 : i32 to vector<1x64xi32>
    %23 = arith.addi %17, %22 : vector<1x64xi32>
    %c32_i32_6 = arith.constant 32 : i32
    %24 = vector.broadcast %c32_i32_6 : i32 to vector<1x64xi32>
    %25 = arith.cmpi slt, %23, %24 : vector<1x64xi32>
    %26 = arith.andi %21, %25 : vector<1x64xi1>
    %c1_i32_7 = arith.constant 1 : i32
    %27 = vector.broadcast %c1_i32_7 : i32 to vector<1x64xi32>
    %28 = arith.addi %17, %27 : vector<1x64xi32>
    %c0_i32_8 = arith.constant 0 : i32
    %29 = vector.broadcast %c0_i32_8 : i32 to vector<1x64xi32>
    %30 = arith.cmpi sge, %28, %29 : vector<1x64xi32>
    %c1_i32_9 = arith.constant 1 : i32
    %31 = vector.broadcast %c1_i32_9 : i32 to vector<1x64xi32>
    %32 = arith.addi %17, %31 : vector<1x64xi32>
    %c32_i32_10 = arith.constant 32 : i32
    %33 = vector.broadcast %c32_i32_10 : i32 to vector<1x64xi32>
    %34 = arith.cmpi slt, %32, %33 : vector<1x64xi32>
    %35 = arith.andi %30, %34 : vector<1x64xi1>
    %c0_11 = arith.constant 0 : index
    %c0_12 = arith.constant 0 : index
    %36 = vector.load %arg2[%c0_11, %c0_12] : memref<8x24xf32, #tpu.memory_space<vmem>>, vector<8x24xf32>
    %c1_i32_13 = arith.constant 1 : i32
    %37 = tpu.dynamic_rotate %0 by %c1_i32_13 dim 1 : vector<8x64xf32>, i32 -> vector<8x64xf32>
    %cst = arith.constant 0.000000e+00 : f32
    %38 = vector.shape_cast %26 : vector<1x64xi1> to vector<1x64xi1>
    %39 = vector.broadcast %38 : vector<1x64xi1> to vector<8x64xi1>
    %40 = vector.broadcast %cst : f32 to vector<8x64xf32>
    %41 = arith.select %39, %37, %40 : vector<8x64xi1>, vector<8x64xf32>
    %c63_i32 = arith.constant 63 : i32
    %42 = tpu.dynamic_rotate %0 by %c63_i32 dim 1 : vector<8x64xf32>, i32 -> vector<8x64xf32>
    %cst_14 = arith.constant 0.000000e+00 : f32
    %43 = vector.shape_cast %35 : vector<1x64xi1> to vector<1x64xi1>
    %44 = vector.broadcast %43 : vector<1x64xi1> to vector<8x64xi1>
    %45 = vector.broadcast %cst_14 : f32 to vector<8x64xf32>
    %46 = arith.select %44, %42, %45 : vector<8x64xi1>, vector<8x64xf32>
    %47 = tpu.concatenate %41, %0, %46 in 0 : vector<8x64xf32>, vector<8x64xf32>, vector<8x64xf32> -> vector<24x64xf32>
    %cst_15 = arith.constant dense<0.000000e+00> : vector<8x64xf32>
    %48 = tpu.matmul %36, %47, %cst_15 {dimension_numbers = #tpu.dot_dimension_numbers<[1], [0], [0], [1], [0, 0, 1, 1], [], []>} : vector<8x24xf32>, vector<24x64xf32>, vector<8x64xf32> -> vector<8x64xf32>
    %c0_16 = arith.constant 0 : index
    %c0_17 = arith.constant 0 : index
    %49 = vector.load %arg3[%c0_16, %c0_17] : memref<8x1xf32, #tpu.memory_space<vmem>>, vector<8x1xf32>
    %50 = vector.broadcast %49 : vector<8x1xf32> to vector<8x64xf32>
    %51 = arith.addf %48, %50 : vector<8x64xf32>
    %cst_18 = arith.constant 0.000000e+00 : f32
    %52 = vector.broadcast %cst_18 : f32 to vector<8x64xf32>
    %53 = arith.maximumf %51, %52 : vector<8x64xf32>
    %c0_19 = arith.constant 0 : index
    %c0_20 = arith.constant 0 : index
    %54 = vector.load %arg4[%c0_19, %c0_20] : memref<8x24xf32, #tpu.memory_space<vmem>>, vector<8x24xf32>
    %c1_i32_21 = arith.constant 1 : i32
    %55 = tpu.dynamic_rotate %53 by %c1_i32_21 dim 1 : vector<8x64xf32>, i32 -> vector<8x64xf32>
    %cst_22 = arith.constant 0.000000e+00 : f32
    %56 = vector.shape_cast %26 : vector<1x64xi1> to vector<1x64xi1>
    %57 = vector.broadcast %56 : vector<1x64xi1> to vector<8x64xi1>
    %58 = vector.broadcast %cst_22 : f32 to vector<8x64xf32>
    %59 = arith.select %57, %55, %58 : vector<8x64xi1>, vector<8x64xf32>
    %c63_i32_23 = arith.constant 63 : i32
    %60 = tpu.dynamic_rotate %53 by %c63_i32_23 dim 1 : vector<8x64xf32>, i32 -> vector<8x64xf32>
    %cst_24 = arith.constant 0.000000e+00 : f32
    %61 = vector.shape_cast %35 : vector<1x64xi1> to vector<1x64xi1>
    %62 = vector.broadcast %61 : vector<1x64xi1> to vector<8x64xi1>
    %63 = vector.broadcast %cst_24 : f32 to vector<8x64xf32>
    %64 = arith.select %62, %60, %63 : vector<8x64xi1>, vector<8x64xf32>
    %65 = tpu.concatenate %59, %53, %64 in 0 : vector<8x64xf32>, vector<8x64xf32>, vector<8x64xf32> -> vector<24x64xf32>
    %cst_25 = arith.constant dense<0.000000e+00> : vector<8x64xf32>
    %66 = tpu.matmul %54, %65, %cst_25 {dimension_numbers = #tpu.dot_dimension_numbers<[1], [0], [0], [1], [0, 0, 1, 1], [], []>} : vector<8x24xf32>, vector<24x64xf32>, vector<8x64xf32> -> vector<8x64xf32>
    %c0_26 = arith.constant 0 : index
    %c0_27 = arith.constant 0 : index
    %67 = vector.load %arg5[%c0_26, %c0_27] : memref<8x1xf32, #tpu.memory_space<vmem>>, vector<8x1xf32>
    %68 = vector.broadcast %67 : vector<8x1xf32> to vector<8x64xf32>
    %69 = arith.addf %66, %68 : vector<8x64xf32>
    %70 = arith.addf %69, %0 : vector<8x64xf32>
    %c0_28 = arith.constant 0 : index
    %c0_29 = arith.constant 0 : index
    %71 = vector.load %arg6[%c0_28, %c0_29] : memref<8x64xf32, #tpu.memory_space<vmem>>, vector<8x64xf32>
    tpu.vector_store %arg6[%c0_28, %c0_29], %70 {strides = array<i32>} : memref<8x64xf32, #tpu.memory_space<vmem>>, vector<8x64xf32>,
    return
  }
  func.func @transform_0(%arg0: i32) -> (i32, i32) {
    %c0_i32 = arith.constant 0 : i32
    %c0_i32_0 = arith.constant 0 : i32
    return %c0_i32, %arg0 : i32, i32
  }
  func.func @transform_1(%arg0: i32) -> (i32, i32) {
    %c0_i32 = arith.constant 0 : i32
    %c0_i32_0 = arith.constant 0 : i32
    %c0_i32_1 = arith.constant 0 : i32
    return %c0_i32, %c0_i32_0 : i32, i32
  }
  func.func @transform_2(%arg0: i32) -> (i32, i32) {
    %c0_i32 = arith.constant 0 : i32
    %c0_i32_0 = arith.constant 0 : i32
    %c0_i32_1 = arith.constant 0 : i32
    return %c0_i32, %c0_i32_0 : i32, i32
  }
  func.func @transform_3(%arg0: i32) -> (i32, i32) {
    %c0_i32 = arith.constant 0 : i32
    %c0_i32_0 = arith.constant 0 : i32
    %c0_i32_1 = arith.constant 0 : i32
    return %c0_i32, %c0_i32_0 : i32, i32
  }
  func.func @transform_4(%arg0: i32) -> (i32, i32) {
    %c0_i32 = arith.constant 0 : i32
    %c0_i32_0 = arith.constant 0 : i32
    %c0_i32_1 = arith.constant 0 : i32
    return %c0_i32, %c0_i32_0 : i32, i32
  }
  func.func @transform_5(%arg0: i32) -> (i32, i32) {
    %c0_i32 = arith.constant 0 : i32
    %c0_i32_0 = arith.constant 0 : i32
    return %c0_i32, %arg0 : i32, i32
  }
}

</mosaic_0001>

<llo_original>
// kernel: tpu_custom_call.1
$region0: #{tpu_custom_call.1}
  #allocation0 [shape = 'u32[]', space=smem, size = 0x4, offset = 0x4, fixed_abs, tag = 'smem constant byte address 0x4 - core index']
  #allocation1 [shape = 'u32[144,128]{1,0:T(1,128)}', space=vmem, size = 0x12000, scoped, tag = 'internal scratch']
  %s0 = inlined_call_operand.vmem [shape: f32[8,64], index: 0, kind: input, shape index: {}]
  %s1 = inlined_call_operand.vmem [shape: f32[8,24], index: 1, kind: input, shape index: {}]
  %s2 = inlined_call_operand.vmem [shape: f32[8,1], index: 2, kind: input, shape index: {}]
  %s3 = inlined_call_operand.hbm [shape: f32[8,24], index: 3, kind: input, shape index: {}]
  %s4 = inlined_call_operand.vmem [shape: f32[8,1], index: 4, kind: input, shape index: {}]
  %s5 = inlined_call_operand.hbm [shape: f32[8,64], index: 5, kind: output, shape index: {}]
  %s6 = sld [smem:[#allocation0]]
  $region34: #{tpu_custom_call.1} parent=0
    _
  %s8 = ssub.s32 1, %s6
  %s9 = scalar_select 0, %s8, %s6
  $region1: #{tpu_custom_call.1} parent=0
    #allocation2 [shape = 'u8[4096]{0}', space=vmem, size = 0x1000, scoped, tag = 'input window, operand 3, single buffered']
    #allocation3 [shape = 's32[1]{0}', space=sflag, size = 0x4, scoped, tag = 'scoped memory for tpu_custom_call.1']
    #allocation4 [shape = 's32[1]{0}', space=sflag, size = 0x4, scoped, tag = 'scoped memory for tpu_custom_call.1']
    #allocation5 [shape = 'u8[4096]{0}', space=vmem, size = 0x1000, scoped, tag = 'output window, operand 0, single buffered']
    %10 = vsyncpa [#allocation3], 0
    %11 = vsyncpa [#allocation4], 0
    // Predicated region
    $region2: #{tpu_custom_call.1} parent=1 // pred_check
      _
    $region3: #{tpu_custom_call.1} parent=1 // pred_check_branch
      %13 = sbr.rel (0) target = $region5
    $region4: #{tpu_custom_call.1} parent=1 // pred_region
      _
    $region5: #{tpu_custom_call.1} parent=1 // pred_fallthru
      _
    // Predicated region
    $region6: #{tpu_custom_call.1} parent=1 // pred_check
      _
    $region7: #{tpu_custom_call.1} parent=1 // pred_check_branch
      %15 = sbr.rel (0) target = $region9
    $region8: #{tpu_custom_call.1} parent=1 // pred_region
      _
    $region9: #{tpu_custom_call.1} parent=1 // pred_fallthru
      _
    // Predicated region
    $region10: #{tpu_custom_call.1} parent=1 // pred_check
      _
    $region11: #{tpu_custom_call.1} parent=1 // pred_check_branch
      %17 = sbr.rel (0) target = $region13
    $region12: #{tpu_custom_call.1} parent=1 // pred_region
      _
    $region13: #{tpu_custom_call.1} parent=1 // pred_fallthru
      _
    // Predicated region
    $region14: #{tpu_custom_call.1} parent=1 // pred_check
      _
    $region15: #{tpu_custom_call.1} parent=1 // pred_check_branch
      %19 = sbr.rel (0) target = $region17
    $region16: #{tpu_custom_call.1} parent=1 // pred_region
      %s21 = ssub.s32 128, 128
      %22 = vsyncadd [#allocation3], %s21
      %s24 = sshll.u32 [#allocation2], 4
      %s25 = int_to_ptr.vmem [resolvable:$true] %s24
      %27 = dma.hbm_to_vmem [thread:$0]  %s3, 128, %s25, [#allocation3]
    $region17: #{tpu_custom_call.1} parent=1 // pred_fallthru
      _
    // Predicated region
    $region18: #{tpu_custom_call.1} parent=1 // pred_check
      _
    $region19: #{tpu_custom_call.1} parent=1 // pred_check_branch
      %29 = sbr.rel (0) target = $region21
    $region20: #{tpu_custom_call.1} parent=1 // pred_region
      _
    $region21: #{tpu_custom_call.1} parent=1 // pred_fallthru
      _
    // Predicated region
    $region22: #{tpu_custom_call.1} parent=1 // pred_check
      _
    $region23: #{tpu_custom_call.1} parent=1 // pred_check_branch
      %31 = sbr.rel (0) target = $region25
    $region24: #{tpu_custom_call.1} parent=1 // pred_region
      %32 = dma.done [#allocation3], 128
    $region25: #{tpu_custom_call.1} parent=1 // pred_fallthru
      _
    %v33 = vld [vmem:[%s0] sm:$0xff]
    %v34 = vlaneseq
    %v35 = vand.u32 %v34, 127
    %vm36 = vcmp.lt.s32.totalorder %v35, 0
    %v37 = vsub.s32 0, %v35
    %v38 = vsel %vm36, %v37, %v35
    %v39 = vshrl.u32 %v38, 5
    %v40 = vand.u32 %v38, 31
    %v41 = vsub.s32 0, %v40
    %v42 = vsel %vm36, %v41, %v40
    %vm43 = vcmp.ne.s32.totalorder %v42, 0
    %vm44 = vcmp.lt.s32.totalorder %v42, 0
    %vm45 = vmand %vm44, %vm43
    %v46 = vadd.s32 %v42, 32
    %v47 = vsel %vm45, %v46, %v42
    %v48 = vadd.s32 %v47, 4294967295
    %vm49 = vcmp.ge.s32.totalorder %v48, 0
    %vm50 = vcmp.lt.s32.totalorder %v48, 32
    %vm51 = vmand %vm49, %vm50
    %v52 = vadd.s32 %v47, 1
    %vm53 = vcmp.ge.s32.totalorder %v52, 0
    %vm54 = vcmp.lt.s32.totalorder %v52, 32
    %vm55 = vmand %vm53, %vm54
    %v56 = vld [vmem:[%s1] sm:$0xff]
    %vm57 = vcmask 1048064
    %58 = vrot.lane.b32.xlu0 %v33, 64
    %v59 = vpop.permute.xlu0 %58
    %v60 = vsel %vm57, %v59, %v33
    %61 = vrot.lane.b32.xlu0 %v60, 64
    %v62 = vpop.permute.xlu0 %61
    %v63 = vsel %vm57, %v62, %v33
    %v64 = vsel %vm51, 1, 0
    %vm65 = vcmp.eq.s32.totalorder %v64, 1
    %67 = vrot.lane.b32.xlu0 %v63, 65
    %v68 = vpop.permute.xlu0 %67
    %v70 = vsel %vm65, %v68, 0.0
    %v71 = vsel %vm55, 1, 0
    %vm72 = vcmp.eq.s32.totalorder %v71, 1
    %73 = vrot.lane.b32.xlu0 %v63, 127
    %v74 = vpop.permute.xlu0 %73
    %v76 = vsel %vm72, %v74, 0.0
    %v77 = vld [vmem:[%s2] sm:$0xff]
    %79 = vset.pattern.permute.xlu0 0
    %80 = vperm.xlu0 %79, %v77
    %v81 = vpop.permute.xlu0 %80
    %vm83 = vcmask 195584
    %v85 = vsel %vm83, %v56, 0
    %87 = vmatprep.subr.mxu0 0.0
    %88 = vmatpush1.msra.mxu0 0.0
    %89 = vmatprep.subr.mxu0 0.0
    %90 = vmatpush1.msra.mxu0 0.0
    %91 = vmatprep.subr.mxu0 0.0
    %92 = vmatpush1.msra.mxu0 0.0
    %93 = vmatprep.subr.mxu0 0.0
    %94 = vmatpush1.msra.mxu0 0.0
    %95 = vmatprep.subr.mxu0 0.0
    %96 = vmatpush1.msra.mxu0 0.0
    %97 = vmatprep.subr.mxu0 0.0
    %98 = vmatpush1.msra.mxu0 0.0
    %99 = vmatprep.subr.mxu0 0.0
    %100 = vmatpush1.msra.mxu0 0.0
    %101 = vmatprep.subr.mxu0 0.0
    %102 = vmatpush1.msra.mxu0 0.0
    %103 = vmatprep.subr.mxu0 0.0
    %104 = vmatpush1.msra.mxu0 0.0
    %105 = vmatprep.subr.mxu0 0.0
    %106 = vmatpush1.msra.mxu0 0.0
    %107 = vmatprep.subr.mxu0 0.0
    %108 = vmatpush1.msra.mxu0 0.0
    %109 = vmatprep.subr.mxu0 0.0
    %110 = vmatpush1.msra.mxu0 0.0
    %111 = vmatprep.subr.mxu0 0.0
    %112 = vmatpush1.msra.mxu0 0.0
    %113 = vmatprep.subr.mxu0 0.0
    %114 = vmatpush1.msra.mxu0 %v76
    %115 = vmatprep.subr.mxu0 0.0
    %116 = vmatpush1.msra.mxu0 %v33
    %117 = vmatprep.subr.mxu0 0.0
    %118 = vmatpush1.msra.mxu0 %v70
    %119 = vmatprep.subr.mxu0 0.0
    %120 = vmatpush2.msra.mxu0 0.0
    %121 = vmatprep.subr.mxu0 0.0
    %122 = vmatpush2.msra.mxu0 0.0
    %123 = vmatprep.subr.mxu0 0.0
    %124 = vmatpush2.msra.mxu0 0.0
    %125 = vmatprep.subr.mxu0 0.0
    %126 = vmatpush2.msra.mxu0 0.0
    %127 = vmatprep.subr.mxu0 0.0
    %128 = vmatpush2.msra.mxu0 0.0
    %129 = vmatprep.subr.mxu0 0.0
    %130 = vmatpush2.msra.mxu0 0.0
    %131 = vmatprep.subr.mxu0 0.0
    %132 = vmatpush2.msra.mxu0 0.0
    %133 = vmatprep.subr.mxu0 0.0
    %134 = vmatpush2.msra.mxu0 0.0
    %135 = vmatprep.subr.mxu0 0.0
    %136 = vmatpush2.msra.mxu0 0.0
    %137 = vmatprep.subr.mxu0 0.0
    %138 = vmatpush2.msra.mxu0 0.0
    %139 = vmatprep.subr.mxu0 0.0
    %140 = vmatpush2.msra.mxu0 0.0
    %141 = vmatprep.subr.mxu0 0.0
    %142 = vmatpush2.msra.mxu0 0.0
    %143 = vmatprep.subr.mxu0 0.0
    %144 = vmatpush2.msra.mxu0 0.0
    %145 = vmatprep.subr.mxu0 0.0
    %146 = vmatpush2.msra.mxu0 0.0
    %147 = vmatprep.subr.mxu0 0.0
    %148 = vmatpush2.msra.mxu0 0.0
    %149 = vmatprep.subr.mxu0 0.0
    %150 = vmatpush2.msra.mxu0 0.0
    %151 = vmatprep.mubr.f32.mxu0 0.0
    %152 = vmatmul.mubr.f32.gmra.mxu0 %v85
    %v153 = vpop.f32.mrf.mxu0
    %v154 = vadd.f32 %v81, %v153
    %v155 = vpop.f32.mrf.mxu0
    %156 = vdwg.mxu0
    %v157 = vmax.f32 %v154, 0.0
    %v158 = vld [vmem:[#allocation2] sm:$0xff]
    %159 = vrot.lane.b32.xlu0 %v157, 64
    %v160 = vpop.permute.xlu0 %159
    %v161 = vsel %vm57, %v160, %v157
    %162 = vrot.lane.b32.xlu0 %v161, 64
    %v163 = vpop.permute.xlu0 %162
    %v164 = vsel %vm57, %v163, %v157
    %166 = vrot.lane.b32.xlu0 %v164, 65
    %v167 = vpop.permute.xlu0 %166
    %v169 = vsel %vm65, %v167, 0.0
    %170 = vrot.lane.b32.xlu0 %v164, 127
    %v171 = vpop.permute.xlu0 %170
    %v173 = vsel %vm72, %v171, 0.0
    %v174 = vld [vmem:[%s4] sm:$0xff]
    %176 = vset.pattern.permute.xlu0 0
    %177 = vperm.xlu0 %176, %v174
    %v178 = vpop.permute.xlu0 %177
    %v181 = vsel %vm83, %v158, 0
    %183 = vmatprep.subr.mxu0 0.0
    %184 = vmatpush1.msra.mxu0 0.0
    %185 = vmatprep.subr.mxu0 0.0
    %186 = vmatpush1.msra.mxu0 0.0
    %187 = vmatprep.subr.mxu0 0.0
    %188 = vmatpush1.msra.mxu0 0.0
    %189 = vmatprep.subr.mxu0 0.0
    %190 = vmatpush1.msra.mxu0 0.0
    %191 = vmatprep.subr.mxu0 0.0
    %192 = vmatpush1.msra.mxu0 0.0
    %193 = vmatprep.subr.mxu0 0.0
    %194 = vmatpush1.msra.mxu0 0.0
    %195 = vmatprep.subr.mxu0 0.0
    %196 = vmatpush1.msra.mxu0 0.0
    %197 = vmatprep.subr.mxu0 0.0
    %198 = vmatpush1.msra.mxu0 0.0
    %199 = vmatprep.subr.mxu0 0.0
    %200 = vmatpush1.msra.mxu0 0.0
    %201 = vmatprep.subr.mxu0 0.0
    %202 = vmatpush1.msra.mxu0 0.0
    %203 = vmatprep.subr.mxu0 0.0
    %204 = vmatpush1.msra.mxu0 0.0
    %205 = vmatprep.subr.mxu0 0.0
    %206 = vmatpush1.msra.mxu0 0.0
    %207 = vmatprep.subr.mxu0 0.0
    %208 = vmatpush1.msra.mxu0 0.0
    %209 = vmatprep.subr.mxu0 0.0
    %210 = vmatpush1.msra.mxu0 %v173
    %211 = vmatprep.subr.mxu0 0.0
    %212 = vmatpush1.msra.mxu0 %v157
    %213 = vmatprep.subr.mxu0 0.0
    %214 = vmatpush1.msra.mxu0 %v169
    %215 = vmatprep.subr.mxu0 0.0
    %216 = vmatpush2.msra.mxu0 0.0
    %217 = vmatprep.subr.mxu0 0.0
    %218 = vmatpush2.msra.mxu0 0.0
    %219 = vmatprep.subr.mxu0 0.0
    %220 = vmatpush2.msra.mxu0 0.0
    %221 = vmatprep.subr.mxu0 0.0
    %222 = vmatpush2.msra.mxu0 0.0
    %223 = vmatprep.subr.mxu0 0.0
    %224 = vmatpush2.msra.mxu0 0.0
    %225 = vmatprep.subr.mxu0 0.0
    %226 = vmatpush2.msra.mxu0 0.0
    %227 = vmatprep.subr.mxu0 0.0
    %228 = vmatpush2.msra.mxu0 0.0
    %229 = vmatprep.subr.mxu0 0.0
    %230 = vmatpush2.msra.mxu0 0.0
    %231 = vmatprep.subr.mxu0 0.0
    %232 = vmatpush2.msra.mxu0 0.0
    %233 = vmatprep.subr.mxu0 0.0
    %234 = vmatpush2.msra.mxu0 0.0
    %235 = vmatprep.subr.mxu0 0.0
    %236 = vmatpush2.msra.mxu0 0.0
    %237 = vmatprep.subr.mxu0 0.0
    %238 = vmatpush2.msra.mxu0 0.0
    %239 = vmatprep.subr.mxu0 0.0
    %240 = vmatpush2.msra.mxu0 0.0
    %241 = vmatprep.subr.mxu0 0.0
    %242 = vmatpush2.msra.mxu0 0.0
    %243 = vmatprep.subr.mxu0 0.0
    %244 = vmatpush2.msra.mxu0 0.0
    %245 = vmatprep.subr.mxu0 0.0
    %246 = vmatpush2.msra.mxu0 0.0
    %247 = vmatprep.mubr.f32.mxu0 0.0
    %248 = vmatmul.mubr.f32.gmra.mxu0 %v181
    %v249 = vpop.f32.mrf.mxu0
    %v250 = vadd.f32 %v178, %v249
    %v251 = vpop.f32.mrf.mxu0
    %252 = vdwg.mxu0
    %v253 = vadd.f32 %v250, %v33
    %vm254 = vcmask 523264
    %255 = vst.msk [vmem:[#allocation5] sm:$0xff] %vm254, %v253
    // Predicated region
    $region26: #{tpu_custom_call.1} parent=1 // pred_check
      _
    $region27: #{tpu_custom_call.1} parent=1 // pred_check_branch
      %257 = sbr.rel (0) target = $region29
    $region28: #{tpu_custom_call.1} parent=1 // pred_region
      %s259 = ssub.s32 128, 128
      %260 = vsyncadd [#allocation4], %s259
      %s262 = sshll.u32 [#allocation5], 4
      %s263 = int_to_ptr.vmem [resolvable:$true] %s262
      %265 = dma.vmem_to_hbm [thread:$0]  %s263, 128, %s5, [#allocation4]
    $region29: #{tpu_custom_call.1} parent=1 // pred_fallthru
      _
    // Predicated region
    $region30: #{tpu_custom_call.1} parent=1 // pred_check
      _
    $region31: #{tpu_custom_call.1} parent=1 // pred_check_branch
      %267 = sbr.rel (0) target = $region33
    $region32: #{tpu_custom_call.1} parent=1 // pred_region
      %268 = dma.done [#allocation4], 128
    $region33: #{tpu_custom_call.1} parent=1 // pred_fallthru
      _
    %269 = vsyncpa [#allocation3], 1
    %270 = vsyncpa [#allocation4], 1

</llo_original>
